<compile_context>
chip_gen: v6e
topology: v6e:2x2x1
jax: 0.10.0
libtpu: 0.0.40
codegen_flags: <defaults>
</compile_context>

<pallas_src>
import functools

import jax
import jax.numpy as jnp
import numpy as np
from jax.experimental import pallas as pl
from jax.experimental.pallas import tpu as pltpu


def _round_up(x, m):
    return ((x + m - 1) // m) * m


def _cdiv(a, b):
    return -(-a // b)


def _vmem_capacity_bytes():
    try:
        return int(pltpu.get_tpu_info().vmem_capacity_bytes)
    except Exception:
        return 64 * 1024 * 1024  # conservative (v7x-sized) default


def _pick_tm(n_anchor, n_contrast, d, bytes_feat, explicit_mask, vmem_cap):
    # Explicit masks are streamed as bf16 -> keep row blocks 16-aligned.
    row_align = 16 if explicit_mask else 8
    if n_anchor <= row_align:
        return row_align
    # At least 2 row blocks so the "parallel" grid axis can use both v7x cores.
    half = _round_up(_cdiv(n_anchor, 2), row_align)
    headroom = (8 << 20) if vmem_cap <= (64 << 20) else (20 << 20)
    budget = vmem_cap - headroom
    # Grid-invariant contrast (single-buffered) + slack.
    fixed = n_contrast * d * bytes_feat + (2 << 20)
    # Per anchor-row cost: ~5 live [*, N] f32 temporaries, streamed mask tile
    # (explicit path), double-buffered anchor / output blocks.
    per_row = (5 * n_contrast * 4
               + (2 * n_contrast * 2 if explicit_mask else 0)
               + 2 * d * 4 + 2 * 128 * 4)
    cap_rows = (budget - fixed) // max(per_row, 1)
    cap_rows = max(row_align, (cap_rows // row_align) * row_align)
    tm_cap = 512 if (vmem_cap >= (96 << 20) and d <= 128) else 256
    return max(row_align, min(half, tm_cap, cap_rows))


def _supcon_kernel(anchor_ref, contrast_ref, pos_a_ref, pos_b_ref, out_ref, *,
                   inv_temperature, block_m, explicit_mask, bf16_matmul):
    i = pl.program_id(0)

    # Apply 1/T to the small [TM, D] operand instead of the [TM, N] logits.
    a = anchor_ref[...] * jnp.float32(inv_temperature)        # [TM, D] f32
    c = contrast_ref[...]                                      # [D, N]
    tm = a.shape[0]
    n = c.shape[1]
    if bf16_matmul:
        a = a.astype(jnp.bfloat16)  # contrast already bf16 from the wrapper

    # logits = (A / T) @ C ; contrast was pre-transposed to [D, N] once in the
    # wrapper, so this is a plain (M,K)x(K,N) MXU contraction.
    logits = jax.lax.dot_general(
        a, c, dimension_numbers=(((1,), (0,)), ((), ())),
        preferred_element_type=jnp.float32)                    # [TM, N] f32

    # Self-contrast mask from a (TM,1) x (1,N) broadcasted compare (anchor row
    # r always corresponds to contrast column r in both 'all' and 'one' modes).
    row_ids = jax.lax.broadcasted_iota(jnp.int32, (tm, 1), 0) + i * block_m
    col_ids = jax.lax.broadcasted_iota(jnp.int32, (1, n), 1)
    self_mask = row_ids == col_ids                             # [TM, N] bool

    # Fold diagonal exclusion into the logits once (exp(-1e30) == 0), then
    # subtract the per-row max (the shift cancels exactly in log_prob, same as
    # the reference's .detach()'d logits_max).
    logits = jnp.where(self_mask, jnp.float32(-1e30), logits)
    logits = logits - jnp.max(logits, axis=1, keepdims=True)
    log_denom = jnp.log(jnp.sum(jnp.exp(logits), axis=1, keepdims=True))  # [TM,1]

    if explicit_mask:
        # pos_a_ref holds this row block of the tiled user mask (bf16).
        pos_w = jnp.where(self_mask, 0.0, pos_a_ref[...].astype(jnp.float32))
        num = jnp.sum(pos_w * logits, axis=1, keepdims=True)   # sum(pos*logits)
        den = jnp.sum(pos_w, axis=1, keepdims=True)            # sum(pos)
    else:
        # Positive mask rebuilt from tiny group-id vectors: same id -> positive
        # pair (minus self).  Kept boolean; no f32 mask is materialized.
        pos = jnp.logical_and(pos_a_ref[...] == pos_b_ref[...],
                              jnp.logical_not(self_mask))      # [TM, N] bool
        num = jnp.sum(jnp.where(pos, logits, 0.0), axis=1, keepdims=True)
        den = jnp.sum(jnp.where(pos, 1.0, 0.0), axis=1, keepdims=True)

    # sum(pos*(logits - log_denom)) == sum(pos*logits) - den*log_denom, so
    # log_prob is never materialized as a [TM, N] array.
    sum_log_prob = num - den * log_denom                       # [TM, 1]

    # Lane-dense (TM,128) store: lane 0 = sum(pos*log_prob), lane 1 = sum(pos).
    # Division + mean (exact reference semantics incl. den==0) run in wrapper.
    lane = jax.lax.broadcasted_iota(jnp.int32, out_ref.shape, 1)
    out_ref[...] = jnp.where(lane == 0, sum_log_prob,
                             jnp.where(lane == 1, den, 0.0))


def supcon_loss(features, labels=None, mask=None, *, temperature=0.07,
                contrast_mode='all', base_temperature=0.07, bf16_matmul=False):
    """features: [bsz, n_views, ...] -> scalar SupCon / SimCLR loss (float32)."""
    if features.ndim < 3:
        raise ValueError('`features` needs to be [bsz, n_views, ...]')
    if features.ndim > 3:
        features = features.reshape(features.shape[0], features.shape[1], -1)
    features = features.astype(jnp.float32)
    bsz, n_views, d = features.shape
    if labels is not None and mask is not None:
        raise ValueError('Cannot define both `labels` and `mask`')

    # torch.cat(torch.unbind(features, dim=1), dim=0): view0 rows, view1 rows...
    contrast_feature = jnp.transpose(features, (1, 0, 2)).reshape(n_views * bsz, d)
    if contrast_mode == 'one':
        anchor_feature = features[:, 0]
        anchor_count = 1
    elif contrast_mode == 'all':
        anchor_feature = contrast_feature
        anchor_count = n_views
    else:
        raise ValueError(f'Unknown mode: {contrast_mode}')

    n_contrast = n_views * bsz
    n_anchor = anchor_count * bsz
    explicit_mask = mask is not None

    feat_dtype = jnp.bfloat16 if bf16_matmul else jnp.float32
    bytes_feat = 2 if bf16_matmul else 4
    vmem_cap = _vmem_capacity_bytes()
    tm = _pick_tm(n_anchor, n_contrast, d, bytes_feat, explicit_mask, vmem_cap)
    n_anchor_pad = _round_up(n_anchor, tm)
    num_blocks = n_anchor_pad // tm
    pad = n_anchor_pad - n_anchor

    anchor_pad = jnp.pad(anchor_feature, ((0, pad), (0, 0)))   # [Npad, D] f32
    # One-time XLA transpose so the kernel never re-transposes the
    # grid-invariant contrast matrix; cast to bf16 here if requested so the
    # resident block is also half the VMEM.
    contrast_t = contrast_feature.T.astype(feat_dtype)         # [D, N]

    if explicit_mask:
        # Streamed row-block tiled user mask in bf16 (exact for the documented
        # {0,1} contract; halves the dominant HBM stream of this path).
        mask_rep = jnp.tile(jnp.asarray(mask, jnp.float32),
                            (anchor_count, n_views)).astype(jnp.bfloat16)
        pos_a = jnp.pad(mask_rep, ((0, pad), (0, 0)))          # [Npad, N] bf16
        pos_b = jnp.zeros((1, 1), jnp.int32)                   # unused dummy
        pos_specs = [pl.BlockSpec((tm, n_contrast), lambda i: (i, 0)),
                     pl.BlockSpec((1, 1), lambda i: (0, 0))]
    else:
        if labels is None:
            gid = jnp.arange(bsz, dtype=jnp.int32)             # SimCLR: sample id
        else:
            labels = jnp.asarray(labels).reshape(-1)
            if labels.shape[0] != bsz:
                raise ValueError('Num of labels does not match num of features')
            gid = labels.astype(jnp.int32)
        col_gid = jnp.tile(gid, n_views)                       # [N] contrast ids
        row_gid = col_gid[:n_anchor] if contrast_mode == 'all' else gid
        # Padded rows are discarded in the wrapper slice, so padding value is
        # irrelevant.
        pos_a = jnp.pad(row_gid, (0, pad)).reshape(n_anchor_pad, 1)
        pos_b = col_gid.reshape(1, n_contrast)
        pos_specs = [pl.BlockSpec((tm, 1), lambda i: (i, 0)),
                     pl.BlockSpec((1, n_contrast), lambda i: (0, 0))]

    kernel = functools.partial(
        _supcon_kernel, inv_temperature=1.0 / float(temperature),
        block_m=tm, explicit_mask=explicit_mask, bf16_matmul=bf16_matmul)

    headroom = (8 << 20) if vmem_cap <= (64 << 20) else (20 << 20)
    pos_stream = (2 * tm * n_contrast * 2) if explicit_mask else (
        2 * (tm + n_contrast) * 4)
    vmem_est = (2 * n_contrast * d * bytes_feat        # contrast (conservative)
                + 2 * tm * d * 4 + 2 * tm * 128 * 4    # anchor / out buffers
                + pos_stream
                + 5 * tm * n_contrast * 4              # live [TM,N] temporaries
                + (2 << 20))
    vmem_limit = int(min(max(vmem_est, 32 << 20), max(vmem_cap - headroom, 32 << 20)))

    def run(single_buffer_contrast):
        if single_buffer_contrast:
            # Grid-invariant block is fetched once; no need for 2 buffers.
            contrast_spec = pl.BlockSpec((d, n_contrast), lambda i: (0, 0),
                                         pipeline_mode=pl.Buffered(1))
        else:
            contrast_spec = pl.BlockSpec((d, n_contrast), lambda i: (0, 0))
        return pl.pallas_call(
            kernel,
            grid=(num_blocks,),
            in_specs=[pl.BlockSpec((tm, d), lambda i: (i, 0)),   # anchor rows
                      contrast_spec,                              # full contrast
                      *pos_specs],
            out_specs=pl.BlockSpec((tm, 128), lambda i: (i, 0)),
            out_shape=jax.ShapeDtypeStruct((n_anchor_pad, 128), jnp.float32),
            compiler_params=pltpu.CompilerParams(
                dimension_semantics=("parallel",),
                vmem_limit_bytes=vmem_limit),
        )(anchor_pad, contrast_t, pos_a, pos_b)

    try:
        out = run(single_buffer_contrast=True)
    except Exception:
        # TODO(synk): remove fallback once pl.Buffered(1) on pallas_call
        # BlockSpecs is confirmed across deployed jaxlib versions.
        out = run(single_buffer_contrast=False)

    sum_log_prob = out[:n_anchor, 0]
    pos_count = out[:n_anchor, 1]
    # Exact reference semantics: divide-by-zero (no positives) propagates NaN
    # just like the PyTorch module.
    mean_log_prob_pos = sum_log_prob / pos_count
    return -(temperature / base_temperature) * jnp.mean(mean_log_prob_pos)


def _supcon_loss_ref(features, labels=None, mask=None, *, temperature=0.07,
                     contrast_mode='all', base_temperature=0.07):
    """Pure-JAX reference mirroring the PyTorch forward."""
    features = features.astype(jnp.float32)
    bsz, n_views, d = features.shape
    if mask is None:
        if labels is None:
            mask = jnp.eye(bsz, dtype=jnp.float32)
        else:
            labels = jnp.asarray(labels).reshape(-1, 1)
            mask = (labels == labels.T).astype(jnp.float32)
    else:
        mask = mask.astype(jnp.float32)
    cf = jnp.transpose(features, (1, 0, 2)).reshape(n_views * bsz, d)
    if contrast_mode == 'one':
        af, anchor_count = features[:, 0], 1
    else:
        af, anchor_count = cf, n_views
    na = anchor_count * bsz
    logits = af @ cf.T / temperature
    logits = logits - jnp.max(logits, axis=1, keepdims=True)
    mask = jnp.tile(mask, (anchor_count, n_views))
    lm = jnp.ones((na, n_views * bsz), jnp.float32)
    lm = lm.at[jnp.arange(na), jnp.arange(na)].set(0.0)
    mask = mask * lm
    exp_logits = jnp.exp(logits) * lm
    log_prob = logits - jnp.log(exp_logits.sum(1, keepdims=True))
    mlpp = (mask * log_prob).sum(1) / mask.sum(1)
    return (-(temperature / base_temperature) * mlpp).mean()


if __name__ == "__main__":
    key = jax.random.PRNGKey(0)
    k1, k2, k3, k4, k5 = jax.random.split(key, 5)

    checks = []  # (name, got, want, atol)

    # Case 1: bsz=8, n_views=2, D=32.
    bsz, n_views, d = 8, 2, 32
    feats = jax.random.normal(k1, (bsz, n_views, d), dtype=jnp.float32)
    feats = feats / jnp.linalg.norm(feats, axis=-1, keepdims=True)
    labels = jax.random.randint(k2, (bsz,), 0, 4)

    checks.append(("simclr", supcon_loss(feats), _supcon_loss_ref(feats), 1e-4))
    checks.append(("supervised", supcon_loss(feats, labels=labels),
                   _supcon_loss_ref(feats, labels=labels), 1e-4))
    m = (labels.reshape(-1, 1) == labels.reshape(1, -1)).astype(jnp.float32)
    checks.append(("explicit_mask", supcon_loss(feats, mask=m),
                   _supcon_loss_ref(feats, mask=m), 1e-4))
    checks.append(("mode_one",
                   supcon_loss(feats, labels=labels, contrast_mode='one'),
                   _supcon_loss_ref(feats, labels=labels, contrast_mode='one'),
                   1e-4))
    # Opt-in bf16 MXU path (looser tolerance: operand-level rounding only).
    checks.append(("supervised_bf16",
                   supcon_loss(feats, labels=labels, bf16_matmul=True),
                   _supcon_loss_ref(feats, labels=labels), 2e-1))

    # Case 2: bsz=5 exercises row padding across two row blocks.
    feats2 = jax.random.normal(k3, (5, n_views, d), dtype=jnp.float32)
    feats2 = feats2 / jnp.linalg.norm(feats2, axis=-1, keepdims=True)
    checks.append(("padded", supcon_loss(feats2), _supcon_loss_ref(feats2), 1e-4))

    # Case 3: multi-block grid with supervised labels.
    feats3 = jax.random.normal(k4, (96, 2, 64), dtype=jnp.float32)
    feats3 = feats3 / jnp.linalg.norm(feats3, axis=-1, keepdims=True)
    labels3 = jax.random.randint(k5, (96,), 0, 10)
    checks.append(("multiblock", supcon_loss(feats3, labels=labels3),
                   _supcon_loss_ref(feats3, labels=labels3), 1e-4))

    jax.block_until_ready([c[1] for c in checks])
    for name, got, want, atol in checks:
        assert np.allclose(np.array(got), np.array(want), rtol=atol, atol=atol), \
            (name, float(got), float(want))

    print("KERNEL_OK")
</pallas_src>

<mosaic_0001>
module attributes {stable_mosaic.version = 11 : i64} {
  func.func @_supcon_kernel(%arg0: i32, %arg1: memref<8x32xf32, #tpu.memory_space<vmem>>, %arg2: memref<32x16xf32, #tpu.memory_space<vmem>>, %arg3: memref<8x1xi32, #tpu.memory_space<vmem>>, %arg4: memref<1x16xi32, #tpu.memory_space<vmem>>, %arg5: memref<8x128xf32, #tpu.memory_space<vmem>>) attributes {dimension_semantics = [#tpu.dimension_semantics<parallel>], iteration_bounds = array<i64: 2>, scalar_prefetch = 0 : i64, scratch_operands = 0 : i64, tpu.core_type = #tpu.core_type<tc>, window_params = [{transform_indices = @transform_0, window_bounds = array<i64: 8, 32>}, {pipeline_mode = #tpu.pipeline_mode<synchronous>, transform_indices = @transform_1, window_bounds = array<i64: 32, 16>}, {transform_indices = @transform_2, window_bounds = array<i64: 8, 1>}, {pipeline_mode = #tpu.pipeline_mode<synchronous>, transform_indices = @transform_3, window_bounds = array<i64: 1, 16>}, {transform_indices = @transform_4, window_bounds = array<i64: 8, 128>}]} {
    %c0 = arith.constant 0 : index
    %c0_0 = arith.constant 0 : index
    %0 = vector.load %arg1[%c0, %c0_0] : memref<8x32xf32, #tpu.memory_space<vmem>>, vector<8x32xf32>
    %cst = arith.constant 14.2857141 : f32
    %1 = vector.broadcast %cst : f32 to vector<8x32xf32>
    %2 = arith.mulf %0, %1 : vector<8x32xf32>
    %c0_1 = arith.constant 0 : index
    %c0_2 = arith.constant 0 : index
    %3 = vector.load %arg2[%c0_1, %c0_2] : memref<32x16xf32, #tpu.memory_space<vmem>>, vector<32x16xf32>
    %cst_3 = arith.constant dense<0.000000e+00> : vector<8x16xf32>
    %4 = tpu.matmul %2, %3, %cst_3 {dimension_numbers = #tpu.dot_dimension_numbers<[1], [0], [0], [1], [0, 0, 1, 1], [], []>} : vector<8x32xf32>, vector<32x16xf32>, vector<8x16xf32> -> vector<8x16xf32>
    %5 = tpu.iota {dimensions = array<i32: 0>} : vector<8x1xi32>
    %c8_i32 = arith.constant 8 : i32
    %6 = arith.muli %arg0, %c8_i32 : i32
    %7 = vector.broadcast %6 : i32 to vector<8x1xi32>
    %8 = arith.addi %5, %7 : vector<8x1xi32>
    %9 = tpu.iota {dimensions = array<i32: 1>} : vector<1x16xi32>
    %10 = vector.broadcast %8 : vector<8x1xi32> to vector<8x16xi32>
    %11 = vector.broadcast %9 : vector<1x16xi32> to vector<8x16xi32>
    %12 = arith.cmpi eq, %10, %11 : vector<8x16xi32>
    %cst_4 = arith.constant -1.000000e+30 : f32
    %13 = vector.broadcast %cst_4 : f32 to vector<8x16xf32>
    %14 = arith.select %12, %13, %4 : vector<8x16xi1>, vector<8x16xf32>
    %cst_5 = arith.constant dense<0xFF800000> : vector<8xf32>
    %15 = vector.multi_reduction <maximumf>, %14, %cst_5 [1] : vector<8x16xf32> to vector<8xf32>
    %16 = vector.shape_cast %15 : vector<8xf32> to vector<8x1xf32>
    %17 = vector.broadcast %16 : vector<8x1xf32> to vector<8x16xf32>
    %18 = arith.subf %14, %17 : vector<8x16xf32>
    %19 = math.exp %18 : vector<8x16xf32>
    %cst_6 = arith.constant dense<0.000000e+00> : vector<8xf32>
    %20 = vector.multi_reduction <add>, %19, %cst_6 [1] : vector<8x16xf32> to vector<8xf32>
    %21 = vector.shape_cast %20 : vector<8xf32> to vector<8x1xf32>
    %22 = math.log %21 : vector<8x1xf32>
    %c0_7 = arith.constant 0 : index
    %c0_8 = arith.constant 0 : index
    %23 = vector.load %arg3[%c0_7, %c0_8] : memref<8x1xi32, #tpu.memory_space<vmem>>, vector<8x1xi32>
    %c0_9 = arith.constant 0 : index
    %c0_10 = arith.constant 0 : index
    %24 = vector.load %arg4[%c0_9, %c0_10] : memref<1x16xi32, #tpu.memory_space<vmem>>, vector<1x16xi32>
    %25 = vector.broadcast %23 : vector<8x1xi32> to vector<8x16xi32>
    %26 = vector.broadcast %24 : vector<1x16xi32> to vector<8x16xi32>
    %27 = arith.cmpi eq, %25, %26 : vector<8x16xi32>
    %cst_11 = arith.constant dense<true> : vector<8x16xi1>
    %28 = arith.xori %12, %cst_11 : vector<8x16xi1>
    %29 = arith.andi %27, %28 : vector<8x16xi1>
    %cst_12 = arith.constant 0.000000e+00 : f32
    %30 = vector.broadcast %cst_12 : f32 to vector<8x16xf32>
    %31 = arith.select %29, %18, %30 : vector<8x16xi1>, vector<8x16xf32>
    %cst_13 = arith.constant dense<0.000000e+00> : vector<8xf32>
    %32 = vector.multi_reduction <add>, %31, %cst_13 [1] : vector<8x16xf32> to vector<8xf32>
    %33 = vector.shape_cast %32 : vector<8xf32> to vector<8x1xf32>
    %cst_14 = arith.constant 1.000000e+00 : f32
    %cst_15 = arith.constant 0.000000e+00 : f32
    %34 = vector.broadcast %cst_14 : f32 to vector<8x16xf32>
    %35 = vector.broadcast %cst_15 : f32 to vector<8x16xf32>
    %36 = arith.select %29, %34, %35 : vector<8x16xi1>, vector<8x16xf32>
    %cst_16 = arith.constant dense<0.000000e+00> : vector<8xf32>
    %37 = vector.multi_reduction <add>, %36, %cst_16 [1] : vector<8x16xf32> to vector<8xf32>
    %38 = vector.shape_cast %37 : vector<8xf32> to vector<8x1xf32>
    %39 = arith.mulf %38, %22 : vector<8x1xf32>
    %40 = arith.subf %33, %39 : vector<8x1xf32>
    %41 = tpu.iota {dimensions = array<i32: 1>} : vector<8x128xi32>
    %c0_i32 = arith.constant 0 : i32
    %42 = vector.broadcast %c0_i32 : i32 to vector<8x128xi32>
    %43 = arith.cmpi eq, %41, %42 : vector<8x128xi32>
    %c1_i32 = arith.constant 1 : i32
    %44 = vector.broadcast %c1_i32 : i32 to vector<8x128xi32>
    %45 = arith.cmpi eq, %41, %44 : vector<8x128xi32>
    %cst_17 = arith.constant 0.000000e+00 : f32
    %46 = vector.shape_cast %38 : vector<8x1xf32> to vector<8x1xf32>
    %47 = vector.broadcast %46 : vector<8x1xf32> to vector<8x128xf32>
    %48 = vector.broadcast %cst_17 : f32 to vector<8x128xf32>
    %49 = arith.select %45, %47, %48 : vector<8x128xi1>, vector<8x128xf32>
    %50 = vector.shape_cast %40 : vector<8x1xf32> to vector<8x1xf32>
    %51 = vector.broadcast %50 : vector<8x1xf32> to vector<8x128xf32>
    %52 = arith.select %43, %51, %49 : vector<8x128xi1>, vector<8x128xf32>
    %c0_18 = arith.constant 0 : index
    %c0_19 = arith.constant 0 : index
    %53 = vector.load %arg5[%c0_18, %c0_19] : memref<8x128xf32, #tpu.memory_space<vmem>>, vector<8x128xf32>
    tpu.vector_store %arg5[%c0_18, %c0_19], %52 {strides = array<i32>} : memref<8x128xf32, #tpu.memory_space<vmem>>, vector<8x128xf32>,
    return
  }
  func.func @transform_0(%arg0: i32) -> (i32, i32) {
    %c0_i32 = arith.constant 0 : i32
    %c0_i32_0 = arith.constant 0 : i32
    return %arg0, %c0_i32 : i32, i32
  }
  func.func @transform_1(%arg0: i32) -> (i32, i32) {
    %c0_i32 = arith.constant 0 : i32
    %c0_i32_0 = arith.constant 0 : i32
    %c0_i32_1 = arith.constant 0 : i32
    return %c0_i32, %c0_i32_0 : i32, i32
  }
  func.func @transform_2(%arg0: i32) -> (i32, i32) {
    %c0_i32 = arith.constant 0 : i32
    %c0_i32_0 = arith.constant 0 : i32
    return %arg0, %c0_i32 : i32, i32
  }
  func.func @transform_3(%arg0: i32) -> (i32, i32) {
    %c0_i32 = arith.constant 0 : i32
    %c0_i32_0 = arith.constant 0 : i32
    %c0_i32_1 = arith.constant 0 : i32
    return %c0_i32, %c0_i32_0 : i32, i32
  }
  func.func @transform_4(%arg0: i32) -> (i32, i32) {
    %c0_i32 = arith.constant 0 : i32
    %c0_i32_0 = arith.constant 0 : i32
    return %arg0, %c0_i32 : i32, i32
  }
}

module attributes {stable_mosaic.version = 11 : i64} {
  func.func @_supcon_kernel(%arg0: i32, %arg1: memref<8x32xf32, #tpu.memory_space<vmem>>, %arg2: memref<32x16xf32, #tpu.memory_space<vmem>>, %arg3: memref<8x1xi32, #tpu.memory_space<vmem>>, %arg4: memref<1x16xi32, #tpu.memory_space<vmem>>, %arg5: memref<8x128xf32, #tpu.memory_space<vmem>>) attributes {dimension_semantics = [#tpu.dimension_semantics<parallel>], iteration_bounds = array<i64: 2>, scalar_prefetch = 0 : i64, scratch_operands = 0 : i64, tpu.core_type = #tpu.core_type<tc>, window_params = [{transform_indices = @transform_0, window_bounds = array<i64: 8, 32>}, {pipeline_mode = #tpu.pipeline_mode<synchronous>, transform_indices = @transform_1, window_bounds = array<i64: 32, 16>}, {transform_indices = @transform_2, window_bounds = array<i64: 8, 1>}, {pipeline_mode = #tpu.pipeline_mode<synchronous>, transform_indices = @transform_3, window_bounds = array<i64: 1, 16>}, {transform_indices = @transform_4, window_bounds = array<i64: 8, 128>}]} {
    %c0 = arith.constant 0 : index
    %c0_0 = arith.constant 0 : index
    %0 = vector.load %arg1[%c0, %c0_0] : memref<8x32xf32, #tpu.memory_space<vmem>>, vector<8x32xf32>
    %cst = arith.constant 14.2857141 : f32
    %1 = vector.broadcast %cst : f32 to vector<8x32xf32>
    %2 = arith.mulf %0, %1 : vector<8x32xf32>
    %c0_1 = arith.constant 0 : index
    %c0_2 = arith.constant 0 : index
    %3 = vector.load %arg2[%c0_1, %c0_2] : memref<32x16xf32, #tpu.memory_space<vmem>>, vector<32x16xf32>
    %cst_3 = arith.constant dense<0.000000e+00> : vector<8x16xf32>
    %4 = tpu.matmul %2, %3, %cst_3 {dimension_numbers = #tpu.dot_dimension_numbers<[1], [0], [0], [1], [0, 0, 1, 1], [], []>} : vector<8x32xf32>, vector<32x16xf32>, vector<8x16xf32> -> vector<8x16xf32>
    %5 = tpu.iota {dimensions = array<i32: 0>} : vector<8x1xi32>
    %c8_i32 = arith.constant 8 : i32
    %6 = arith.muli %arg0, %c8_i32 : i32
    %7 = vector.broadcast %6 : i32 to vector<8x1xi32>
    %8 = arith.addi %5, %7 : vector<8x1xi32>
    %9 = tpu.iota {dimensions = array<i32: 1>} : vector<1x16xi32>
    %10 = vector.broadcast %8 : vector<8x1xi32> to vector<8x16xi32>
    %11 = vector.broadcast %9 : vector<1x16xi32> to vector<8x16xi32>
    %12 = arith.cmpi eq, %10, %11 : vector<8x16xi32>
    %cst_4 = arith.constant -1.000000e+30 : f32
    %13 = vector.broadcast %cst_4 : f32 to vector<8x16xf32>
    %14 = arith.select %12, %13, %4 : vector<8x16xi1>, vector<8x16xf32>
    %cst_5 = arith.constant dense<0xFF800000> : vector<8xf32>
    %15 = vector.multi_reduction <maximumf>, %14, %cst_5 [1] : vector<8x16xf32> to vector<8xf32>
    %16 = vector.shape_cast %15 : vector<8xf32> to vector<8x1xf32>
    %17 = vector.broadcast %16 : vector<8x1xf32> to vector<8x16xf32>
    %18 = arith.subf %14, %17 : vector<8x16xf32>
    %19 = math.exp %18 : vector<8x16xf32>
    %cst_6 = arith.constant dense<0.000000e+00> : vector<8xf32>
    %20 = vector.multi_reduction <add>, %19, %cst_6 [1] : vector<8x16xf32> to vector<8xf32>
    %21 = vector.shape_cast %20 : vector<8xf32> to vector<8x1xf32>
    %22 = math.log %21 : vector<8x1xf32>
    %c0_7 = arith.constant 0 : index
    %c0_8 = arith.constant 0 : index
    %23 = vector.load %arg3[%c0_7, %c0_8] : memref<8x1xi32, #tpu.memory_space<vmem>>, vector<8x1xi32>
    %c0_9 = arith.constant 0 : index
    %c0_10 = arith.constant 0 : index
    %24 = vector.load %arg4[%c0_9, %c0_10] : memref<1x16xi32, #tpu.memory_space<vmem>>, vector<1x16xi32>
    %25 = vector.broadcast %23 : vector<8x1xi32> to vector<8x16xi32>
    %26 = vector.broadcast %24 : vector<1x16xi32> to vector<8x16xi32>
    %27 = arith.cmpi eq, %25, %26 : vector<8x16xi32>
    %cst_11 = arith.constant dense<true> : vector<8x16xi1>
    %28 = arith.xori %12, %cst_11 : vector<8x16xi1>
    %29 = arith.andi %27, %28 : vector<8x16xi1>
    %cst_12 = arith.constant 0.000000e+00 : f32
    %30 = vector.broadcast %cst_12 : f32 to vector<8x16xf32>
    %31 = arith.select %29, %18, %30 : vector<8x16xi1>, vector<8x16xf32>
    %cst_13 = arith.constant dense<0.000000e+00> : vector<8xf32>
    %32 = vector.multi_reduction <add>, %31, %cst_13 [1] : vector<8x16xf32> to vector<8xf32>
    %33 = vector.shape_cast %32 : vector<8xf32> to vector<8x1xf32>
    %cst_14 = arith.constant 1.000000e+00 : f32
    %cst_15 = arith.constant 0.000000e+00 : f32
    %34 = vector.broadcast %cst_14 : f32 to vector<8x16xf32>
    %35 = vector.broadcast %cst_15 : f32 to vector<8x16xf32>
    %36 = arith.select %29, %34, %35 : vector<8x16xi1>, vector<8x16xf32>
    %cst_16 = arith.constant dense<0.000000e+00> : vector<8xf32>
    %37 = vector.multi_reduction <add>, %36, %cst_16 [1] : vector<8x16xf32> to vector<8xf32>
    %38 = vector.shape_cast %37 : vector<8xf32> to vector<8x1xf32>
    %39 = arith.mulf %38, %22 : vector<8x1xf32>
    %40 = arith.subf %33, %39 : vector<8x1xf32>
    %41 = tpu.iota {dimensions = array<i32: 1>} : vector<8x128xi32>
    %c0_i32 = arith.constant 0 : i32
    %42 = vector.broadcast %c0_i32 : i32 to vector<8x128xi32>
    %43 = arith.cmpi eq, %41, %42 : vector<8x128xi32>
    %c1_i32 = arith.constant 1 : i32
    %44 = vector.broadcast %c1_i32 : i32 to vector<8x128xi32>
    %45 = arith.cmpi eq, %41, %44 : vector<8x128xi32>
    %cst_17 = arith.constant 0.000000e+00 : f32
    %46 = vector.shape_cast %38 : vector<8x1xf32> to vector<8x1xf32>
    %47 = vector.broadcast %46 : vector<8x1xf32> to vector<8x128xf32>
    %48 = vector.broadcast %cst_17 : f32 to vector<8x128xf32>
    %49 = arith.select %45, %47, %48 : vector<8x128xi1>, vector<8x128xf32>
    %50 = vector.shape_cast %40 : vector<8x1xf32> to vector<8x1xf32>
    %51 = vector.broadcast %50 : vector<8x1xf32> to vector<8x128xf32>
    %52 = arith.select %43, %51, %49 : vector<8x128xi1>, vector<8x128xf32>
    %c0_18 = arith.constant 0 : index
    %c0_19 = arith.constant 0 : index
    %53 = vector.load %arg5[%c0_18, %c0_19] : memref<8x128xf32, #tpu.memory_space<vmem>>, vector<8x128xf32>
    tpu.vector_store %arg5[%c0_18, %c0_19], %52 {strides = array<i32>} : memref<8x128xf32, #tpu.memory_space<vmem>>, vector<8x128xf32>,
    return
  }
  func.func @transform_0(%arg0: i32) -> (i32, i32) {
    %c0_i32 = arith.constant 0 : i32
    %c0_i32_0 = arith.constant 0 : i32
    return %arg0, %c0_i32 : i32, i32
  }
  func.func @transform_1(%arg0: i32) -> (i32, i32) {
    %c0_i32 = arith.constant 0 : i32
    %c0_i32_0 = arith.constant 0 : i32
    %c0_i32_1 = arith.constant 0 : i32
    return %c0_i32, %c0_i32_0 : i32, i32
  }
  func.func @transform_2(%arg0: i32) -> (i32, i32) {
    %c0_i32 = arith.constant 0 : i32
    %c0_i32_0 = arith.constant 0 : i32
    return %arg0, %c0_i32 : i32, i32
  }
  func.func @transform_3(%arg0: i32) -> (i32, i32) {
    %c0_i32 = arith.constant 0 : i32
    %c0_i32_0 = arith.constant 0 : i32
    %c0_i32_1 = arith.constant 0 : i32
    return %c0_i32, %c0_i32_0 : i32, i32
  }
  func.func @transform_4(%arg0: i32) -> (i32, i32) {
    %c0_i32 = arith.constant 0 : i32
    %c0_i32_0 = arith.constant 0 : i32
    return %arg0, %c0_i32 : i32, i32
  }
}

</mosaic_0001>

<llo_original>
// kernel: tpu_custom_call.1
$region0: #{tpu_custom_call.1}
  #allocation0 [shape = 'u32[]', space=smem, size = 0x4, offset = 0x4, fixed_abs, tag = 'smem constant byte address 0x4 - core index']
  #allocation1 [shape = 'u32[144,128]{1,0:T(1,128)}', space=vmem, size = 0x12000, scoped, tag = 'internal scratch']
  %s0 = inlined_call_operand.vmem [shape: f32[16,32], index: 0, kind: input, shape index: {}]
  %s1 = inlined_call_operand.vmem [shape: f32[32,16], index: 1, kind: input, shape index: {}]
  %s2 = inlined_call_operand.vmem [shape: s32[16,1], index: 2, kind: input, shape index: {}]
  %s3 = inlined_call_operand.vmem [shape: s32[1,16], index: 3, kind: input, shape index: {}]
  %s4 = inlined_call_operand.hbm [shape: f32[16,128], index: 4, kind: output, shape index: {}]
  %s5 = sld [smem:[#allocation0]]
  $region49: #{tpu_custom_call.1} parent=0
    _
  %s7 = ssub.s32 1, %s5
  %s8 = scalar_select 0, %s7, %s5
  $region1: #{tpu_custom_call.1} parent=0
    #allocation2 [shape = 'u8[8192]{0}', space=vmem, size = 0x2000, scoped, tag = 'output window, operand 0']
    #allocation3 [shape = 's32[2]{0}', space=sflag, size = 0x8, scoped, tag = 'scoped memory for tpu_custom_call.1']
    %9 = vsyncpa [#allocation3], 0
    %s10 = scalar_lea.sflag [#allocation3], 1
    %11 = vsyncpa %s10, 0
    loop: start=0, step=1, limit=4
    $region2: #{tpu_custom_call.1} parent=1 // loop_pre_header
      _
    $region3: #{tpu_custom_call.1} parent=1 // loop_header
      %s13 = sphi 0, %s17
      %p14 = scmp.ge.s32.totalorder %s13, 4
      %s23 = sphi 0, %s25
      %s26 = sphi 0, %s23
      %s27 = sphi 0, %s26
      %s43 = sphi 0, %s27
      %s47 = sphi 0, %s47
      %s49 = sphi 0, %s47
      %s50 = sphi 0, %s49
      %s64 = sphi 0, %s50
      %s70 = sphi 0, %s72
      %s73 = sphi 0, %s70
      %s74 = sphi 0, %s73
      %s90 = sphi 0, %s74
      %s94 = sphi 0, %s94
      %s96 = sphi 0, %s94
      %s97 = sphi 0, %s96
      %s111 = sphi 0, %s97
      %s117 = sphi 0, %s119
      %s120 = sphi 0, %s117
      %s121 = sphi 0, %s120
      %s137 = sphi 0, %s121
    $region4: #{tpu_custom_call.1} parent=1 // loop_header_branch
      %16 = sbr.rel (%p14) target = $region8
    $region5: #{tpu_custom_call.1} parent=1 // loop_body
      %s18 = ssub.s32 %s13, 1
      %s19 = ssub.s32 %s13, 2
      %s20 = sadd.s32 %s13, 1
      %s21 = ssub.s32 %s13, %s20
      %p22 = scmp.eq.s32.totalorder %s21, 0
      %s24 = sadd.s32 %s23, 1
      %s25 = scalar_select %p22, %s23, %s24
      %p28 = pneg %p22
      %p29 = scmp.eq.s32.totalorder %s13, 1
      %p30 = por %p28, %p29
      %p31 = scmp.ne.s32.totalorder %s23, %s26
      %p32 = scmp.eq.s32.totalorder %s13, 0
      %p33 = por %p31, %p32
      %p34 = scmp.ne.s32.totalorder %s23, %s26
      %p35 = scmp.eq.s32.totalorder %s18, 1
      %p36 = por %p34, %p35
      %p37 = scmp.ne.s32.totalorder %s26, %s27
      %p38 = scmp.eq.s32.totalorder %s18, 0
      %p39 = por %p37, %p38
      %p40 = scmp.ne.s32.totalorder %s26, %s27
      %p41 = scmp.eq.s32.totalorder %s19, 1
      %p42 = por %p40, %p41
      %p44 = scmp.ne.s32.totalorder %s27, %s43
      %p45 = scmp.eq.s32.totalorder %s19, 0
      %p46 = por %p44, %p45
      %s48 = sadd.s32 %s47, 1
      %p51 = scmp.eq.s32.totalorder %s13, 1
      %p52 = scmp.ne.s32.totalorder %s47, %s49
      %p53 = scmp.eq.s32.totalorder %s13, 0
      %p54 = por %p52, %p53
      %p55 = scmp.ne.s32.totalorder %s47, %s49
      %p56 = scmp.eq.s32.totalorder %s18, 1
      %p57 = por %p55, %p56
      %p58 = scmp.ne.s32.totalorder %s49, %s50
      %p59 = scmp.eq.s32.totalorder %s18, 0
      %p60 = por %p58, %p59
      %p61 = scmp.ne.s32.totalorder %s49, %s50
      %p62 = scmp.eq.s32.totalorder %s19, 1
      %p63 = por %p61, %p62
      %p65 = scmp.ne.s32.totalorder %s50, %s64
      %p66 = scmp.eq.s32.totalorder %s19, 0
      %p67 = por %p65, %p66
      %s68 = ssub.s32 %s13, %s20
      %p69 = scmp.eq.s32.totalorder %s68, 0
      %s71 = sadd.s32 %s70, 1
      %s72 = scalar_select %p69, %s70, %s71
      %p75 = pneg %p69
      %p76 = scmp.eq.s32.totalorder %s13, 1
      %p77 = por %p75, %p76
      %p78 = scmp.ne.s32.totalorder %s70, %s73
      %p79 = scmp.eq.s32.totalorder %s13, 0
      %p80 = por %p78, %p79
      %p81 = scmp.ne.s32.totalorder %s70, %s73
      %p82 = scmp.eq.s32.totalorder %s18, 1
      %p83 = por %p81, %p82
      %p84 = scmp.ne.s32.totalorder %s73, %s74
      %p85 = scmp.eq.s32.totalorder %s18, 0
      %p86 = por %p84, %p85
      %p87 = scmp.ne.s32.totalorder %s73, %s74
      %p88 = scmp.eq.s32.totalorder %s19, 1
      %p89 = por %p87, %p88
      %p91 = scmp.ne.s32.totalorder %s74, %s90
      %p92 = scmp.eq.s32.totalorder %s19, 0
      %p93 = por %p91, %p92
      %s95 = sadd.s32 %s94, 1
      %p98 = scmp.eq.s32.totalorder %s13, 1
      %p99 = scmp.ne.s32.totalorder %s94, %s96
      %p100 = scmp.eq.s32.totalorder %s13, 0
      %p101 = por %p99, %p100
      %p102 = scmp.ne.s32.totalorder %s94, %s96
      %p103 = scmp.eq.s32.totalorder %s18, 1
      %p104 = por %p102, %p103
      %p105 = scmp.ne.s32.totalorder %s96, %s97
      %p106 = scmp.eq.s32.totalorder %s18, 0
      %p107 = por %p105, %p106
      %p108 = scmp.ne.s32.totalorder %s96, %s97
      %p109 = scmp.eq.s32.totalorder %s19, 1
      %p110 = por %p108, %p109
      %p112 = scmp.ne.s32.totalorder %s97, %s111
      %p113 = scmp.eq.s32.totalorder %s19, 0
      %p114 = por %p112, %p113
      %s115 = ssub.s32 %s13, %s20
      %p116 = scmp.eq.s32.totalorder %s115, 0
      %s118 = sadd.s32 %s117, 1
      %s119 = scalar_select %p116, %s117, %s118
      %p122 = pneg %p116
      %p123 = scmp.eq.s32.totalorder %s13, 1
      %p124 = por %p122, %p123
      %p125 = scmp.ne.s32.totalorder %s117, %s120
      %p126 = scmp.eq.s32.totalorder %s13, 0
      %p127 = por %p125, %p126
      %p128 = scmp.ne.s32.totalorder %s117, %s120
      %p129 = scmp.eq.s32.totalorder %s18, 1
      %p130 = por %p128, %p129
      %p131 = scmp.ne.s32.totalorder %s120, %s121
      %p132 = scmp.eq.s32.totalorder %s18, 0
      %p133 = por %p131, %p132
      %p134 = scmp.ne.s32.totalorder %s120, %s121
      %p135 = scmp.eq.s32.totalorder %s19, 1
      %p136 = por %p134, %p135
      %p138 = scmp.ne.s32.totalorder %s121, %s137
      %p139 = scmp.eq.s32.totalorder %s19, 0
      %p140 = por %p138, %p139
      %p141 = scmp.le.s32.totalorder 1, %s13
      %p142 = scmp.lt.s32.totalorder %s13, 3
      %p143 = pnand %p141, %p142
      %p144 = pneg %p143
      // Predicated region
      $region9: #{tpu_custom_call.1} parent=5 // pred_check
        _
      $region10: #{tpu_custom_call.1} parent=5 // pred_check_branch
        %146 = sbr.rel (%p143) target = $region12
      $region11: #{tpu_custom_call.1} parent=5 // pred_region
        %s147 = ssub.s32 %s13, 1
        // Predicated region
        $region13: #{tpu_custom_call.1} parent=11 // pred_check
          %p148 = pneg %p60
        $region14: #{tpu_custom_call.1} parent=11 // pred_check_branch
          %150 = sbr.rel (%p148) target = $region16
        $region15: #{tpu_custom_call.1} parent=11 // pred_region
          _
        $region16: #{tpu_custom_call.1} parent=11 // pred_fallthru
          _
        // Predicated region
        $region17: #{tpu_custom_call.1} parent=11 // pred_check
          %p151 = pneg %p107
        $region18: #{tpu_custom_call.1} parent=11 // pred_check_branch
          %153 = sbr.rel (%p151) target = $region20
        $region19: #{tpu_custom_call.1} parent=11 // pred_region
          _
        $region20: #{tpu_custom_call.1} parent=11 // pred_fallthru
          _
      $region12: #{tpu_custom_call.1} parent=5 // pred_fallthru
        _
      %p154 = scmp.lt.s32.totalorder %s13, 2
      // Predicated region
      $region21: #{tpu_custom_call.1} parent=5 // pred_check
        %p155 = pneg %p154
      $region22: #{tpu_custom_call.1} parent=5 // pred_check_branch
        %157 = sbr.rel (%p155) target = $region24
      $region23: #{tpu_custom_call.1} parent=5 // pred_region
        // Predicated region
        $region25: #{tpu_custom_call.1} parent=23 // pred_check
          %p158 = pneg %p33
        $region26: #{tpu_custom_call.1} parent=23 // pred_check_branch
          %160 = sbr.rel (%p158) target = $region28
        $region27: #{tpu_custom_call.1} parent=23 // pred_region
          %p161 = scmp.lt.s32.totalorder %s13, 1
          %s162 = scalar_select %p161, %s13, 1
          %s163 = smul.addr %s162, 8
          %s164 = scalar_lea.vmem %s0, %s163
        $region28: #{tpu_custom_call.1} parent=23 // pred_fallthru
          _
        // Predicated region
        $region29: #{tpu_custom_call.1} parent=23 // pred_check
          %p165 = pneg %p80
        $region30: #{tpu_custom_call.1} parent=23 // pred_check_branch
          %167 = sbr.rel (%p165) target = $region32
        $region31: #{tpu_custom_call.1} parent=23 // pred_region
          %p168 = scmp.lt.s32.totalorder %s13, 1
          %s169 = scalar_select %p168, %s13, 1
          %s170 = smul.addr %s169, 8
          %s171 = scalar_lea.vmem %s2, %s170
        $region32: #{tpu_custom_call.1} parent=23 // pred_fallthru
          _
      $region24: #{tpu_custom_call.1} parent=5 // pred_fallthru
        _
      %p172 = scmp.le.s32.totalorder 1, %s13
      %p173 = scmp.lt.s32.totalorder %s13, 3
      %p174 = pnand %p172, %p173
      %p175 = pneg %p174
      // Predicated region
      $region33: #{tpu_custom_call.1} parent=5 // pred_check
        _
      $region34: #{tpu_custom_call.1} parent=5 // pred_check_branch
        %177 = sbr.rel (%p174) target = $region36
      $region35: #{tpu_custom_call.1} parent=5 // pred_region
        %s178 = ssub.s32 %s13, 1
        %p179 = scmp.lt.s32.totalorder %s18, 1
        %s180 = scalar_select %p179, %s18, 1
        %s181 = smul.addr %s180, 8
        %s182 = scalar_lea.vmem %s0, %s181
        %p183 = pneg %p39
        %p184 = pneg %p36
        %p185 = pneg %p60
        %p186 = pneg %p57
        %p187 = scmp.lt.s32.totalorder %s18, 1
        %s188 = scalar_select %p187, %s18, 1
        %s189 = smul.addr %s188, 8
        %s190 = scalar_lea.vmem %s2, %s189
        %p191 = pneg %p86
        %p192 = pneg %p83
        %p193 = pneg %p107
        %p194 = pneg %p104
        %p195 = pneg %p133
        %p196 = pneg %p130
        %s197 = sand.u32 %s120, 1
        %s198 = scalar_lea.sflag [#allocation3], %s197
        %s199 = sand.u32 %s120, 1
        %s200 = smul.addr %s199, 8
        %s201 = scalar_lea.vmem [#allocation2], %s200
        %p202 = scmp.lt.s32.totalorder %s18, 1
        %s203 = scalar_select %p202, %s18, 1
        %s204 = smul.addr %s203, 8
        %s205 = scalar_lea.vmem %s0, %s204
        %p206 = scmp.lt.s32.totalorder %s18, 1
        %s207 = scalar_select %p206, %s18, 1
        %s208 = smul.addr %s207, 8
        %s209 = scalar_lea.vmem %s2, %s208
        %v210 = vld [vmem:[%s205] sm:$0xff]
        %v211 = vmul.f32 %v210, 14.285714
        %v212 = vld [vmem:[%s1] sm:$0xff]
        %v213 = vld [vmem:[%s1 + $0x8] sm:$0xff]
        %v214 = vld [vmem:[%s1 + $0x10] sm:$0xff]
        %v215 = vld [vmem:[%s1 + $0x18] sm:$0xff]
        %vm216 = vcmask 261120
        %v218 = vsel %vm216, %v211, 0
        %220 = vmatprep.subr.mxu0 0.0
        %221 = vmatpush1.msra.mxu0 0.0
        %222 = vmatprep.subr.mxu0 0.0
        %223 = vmatpush1.msra.mxu0 0.0
        %224 = vmatprep.subr.mxu0 0.0
        %225 = vmatpush1.msra.mxu0 0.0
        %226 = vmatprep.subr.mxu0 0.0
        %227 = vmatpush1.msra.mxu0 0.0
        %228 = vmatprep.subr.mxu0 0.0
        %229 = vmatpush1.msra.mxu0 0.0
        %230 = vmatprep.subr.mxu0 0.0
        %231 = vmatpush1.msra.mxu0 0.0
        %232 = vmatprep.subr.mxu0 0.0
        %233 = vmatpush1.msra.mxu0 0.0
        %234 = vmatprep.subr.mxu0 0.0
        %235 = vmatpush1.msra.mxu0 0.0
        %236 = vmatprep.subr.mxu0 0.0
        %237 = vmatpush1.msra.mxu0 0.0
        %238 = vmatprep.subr.mxu0 0.0
        %239 = vmatpush1.msra.mxu0 0.0
        %240 = vmatprep.subr.mxu0 0.0
        %241 = vmatpush1.msra.mxu0 0.0
        %242 = vmatprep.subr.mxu0 0.0
        %243 = vmatpush1.msra.mxu0 0.0
        %244 = vmatprep.subr.mxu0 0.0
        %245 = vmatpush1.msra.mxu0 %v215
        %246 = vmatprep.subr.mxu0 0.0
        %247 = vmatpush1.msra.mxu0 %v214
        %248 = vmatprep.subr.mxu0 0.0
        %249 = vmatpush1.msra.mxu0 %v213
        %250 = vmatprep.subr.mxu0 0.0
        %251 = vmatpush1.msra.mxu0 %v212
        %252 = vmatprep.subr.mxu0 0.0
        %253 = vmatpush2.msra.mxu0 0.0
        %254 = vmatprep.subr.mxu0 0.0
        %255 = vmatpush2.msra.mxu0 0.0
        %256 = vmatprep.subr.mxu0 0.0
        %257 = vmatpush2.msra.mxu0 0.0
        %258 = vmatprep.subr.mxu0 0.0
        %259 = vmatpush2.msra.mxu0 0.0
        %260 = vmatprep.subr.mxu0 0.0
        %261 = vmatpush2.msra.mxu0 0.0
        %262 = vmatprep.subr.mxu0 0.0
        %263 = vmatpush2.msra.mxu0 0.0
        %264 = vmatprep.subr.mxu0 0.0
        %265 = vmatpush2.msra.mxu0 0.0
        %266 = vmatprep.subr.mxu0 0.0
        %267 = vmatpush2.msra.mxu0 0.0
        %268 = vmatprep.subr.mxu0 0.0
        %269 = vmatpush2.msra.mxu0 0.0
        %270 = vmatprep.subr.mxu0 0.0
        %271 = vmatpush2.msra.mxu0 0.0
        %272 = vmatprep.subr.mxu0 0.0
        %273 = vmatpush2.msra.mxu0 0.0
        %274 = vmatprep.subr.mxu0 0.0
        %275 = vmatpush2.msra.mxu0 0.0
        %276 = vmatprep.subr.mxu0 0.0
        %277 = vmatpush2.msra.mxu0 0.0
        %278 = vmatprep.subr.mxu0 0.0
        %279 = vmatpush2.msra.mxu0 0.0
        %280 = vmatprep.subr.mxu0 0.0
        %281 = vmatpush2.msra.mxu0 0.0
        %282 = vmatprep.subr.mxu0 0.0
        %283 = vmatpush2.msra.mxu0 0.0
        %284 = vmatprep.mubr.f32.mxu0 0.0
        %285 = vmatmul.mubr.f32.gmra.mxu0 %v218
        %v286 = vpop.f32.mrf.mxu0
        %v287 = vadd.f32 0.0, %v286
        %v288 = vpop.f32.mrf.mxu0
        %289 = vdwg.mxu0
        %v290 = vlaneseq
        %v291 = vshrl.u32 %v290, 7
        %s292 = smul.u32 %s18, 8
        %v293 = vstv %s292
        %v294 = vadd.s32 %v291, %v293
        %v295 = vlaneseq
        %v296 = vand.u32 %v295, 127
        %vm297 = vcmp.eq.s32.totalorder %v294, %v296
        %v298 = vsel %vm297, -1e+30, %v287
        %vm299 = vcmask 130048
        %v300 = vsel %vm299, %v298, -inf
        %301 = vmax.xlane.f32.xlu0 %v300
        %v302 = vpop.xlane.xlu0 %301
        %v303 = vsub.f32 %v298, %v302
        %v304 = vmul.f32 %v303, 1.442695
        %v305 = vpow.pop %v304
        %v306 = vsel %vm299, %v305, 0.0
        %307 = vadd.xlane.f32.xlu0 %v306
        %v308 = vpop.xlane.xlu0 %307
        %v309 = vlog2.pop %v308
        %v310 = vmul.f32 %v309, 0.6931472
        %v311 = vld [vmem:[%s209] sm:$0xff]
        %v312 = vld [vmem:[%s3] sm:$0x1]
        %313 = vset.pattern.permute.xlu0 0
        %314 = vperm.xlu0 %313, %v311
        %v315 = vpop.permute.xlu0 %314
        %v316 = vlaneseq
        %v317 = vshrl.u32 %v316, 7
        %v318 = vsub.s32 0, %v317
        %v319 = vrot.slane %v312, %v318
        %vm320 = vcmp.eq.s32.totalorder %v315, %v319
        %vm321 = vmxor %vm297, 1
        %vm322 = vmand %vm320, %vm321
        %v323 = vsel %vm322, %v303, 0.0
        %v324 = vsel %vm299, %v323, 0.0
        %325 = vadd.xlane.f32.xlu0 %v324
        %v326 = vpop.xlane.xlu0 %325
        %v327 = vsel %vm322, 1.0, 0.0
        %v328 = vsel %vm299, %v327, 0.0
        %329 = vadd.xlane.f32.xlu0 %v328
        %v330 = vpop.xlane.xlu0 %329
        %v331 = vmul.f32 %v330, %v310
        %v332 = vsub.f32 %v326, %v331
        %vm333 = vcmp.eq.s32.totalorder %v296, 0
        %vm334 = vcmp.eq.s32.totalorder %v296, 1
        %v335 = vsel %vm334, %v330, 0.0
        %v336 = vsel %vm333, %v332, %v335
        %337 = vst [vmem:[%s201] sm:$0xff] %v336
        %s338 = sand.u32 %s120, 1
        %s339 = scalar_lea.sflag [#allocation3], %s338
        %s340 = sand.u32 %s120, 1
        %s341 = smul.addr %s340, 8
        %s342 = scalar_lea.vmem [#allocation2], %s341
        // Predicated region
        $region37: #{tpu_custom_call.1} parent=35 // pred_check
          %p343 = pneg %p130
        $region38: #{tpu_custom_call.1} parent=35 // pred_check_branch
          %345 = sbr.rel (%p343) target = $region40
        $region39: #{tpu_custom_call.1} parent=35 // pred_region
          %s347 = ssub.s32 128, 128
          %348 = vsyncadd %s339, %s347
          %s349 = smul.addr %s18, 128
          %s350 = scalar_lea.hbm %s4, %s349
          %s352 = sshll.u32 %s342, 4
          %s353 = int_to_ptr.vmem [resolvable:$true] %s352
          %355 = dma.vmem_to_hbm [thread:$0]  %s353, 128, %s350, %s339
        $region40: #{tpu_custom_call.1} parent=35 // pred_fallthru
          _
      $region36: #{tpu_custom_call.1} parent=5 // pred_fallthru
        _
      %p356 = scmp.le.s32.totalorder 2, %s13
      // Predicated region
      $region41: #{tpu_custom_call.1} parent=5 // pred_check
        %p357 = pneg %p356
      $region42: #{tpu_custom_call.1} parent=5 // pred_check_branch
        %359 = sbr.rel (%p357) target = $region44
      $region43: #{tpu_custom_call.1} parent=5 // pred_region
        %s360 = ssub.s32 %s13, 2
        // Predicated region
        $region45: #{tpu_custom_call.1} parent=43 // pred_check
          %p361 = pneg %p136
        $region46: #{tpu_custom_call.1} parent=43 // pred_check_branch
          %363 = sbr.rel (%p361) target = $region48
        $region47: #{tpu_custom_call.1} parent=43 // pred_region
          %s364 = sand.u32 %s121, 1
          %s365 = scalar_lea.sflag [#allocation3], %s364
          %s366 = sand.u32 %s121, 1
          %s367 = smul.addr %s366, 8
          %s368 = scalar_lea.vmem [#allocation2], %s367
          %369 = dma.done %s365, 128
        $region48: #{tpu_custom_call.1} parent=43 // pred_fallthru
          _
      $region44: #{tpu_custom_call.1} parent=5 // pred_fallthru
        _
    $region6: #{tpu_custom_call.1} parent=1 // loop_footer
      %s17 = sadd.s32 1, %s13
    $region7: #{tpu_custom_call.1} parent=1 // loop_footer_branch
      %12 = sbr.rel target = $region3
    $region8: #{tpu_custom_call.1} parent=1 // loop_exit
      _
    %370 = vsyncpa [#allocation3], 1
    %s371 = scalar_lea.sflag [#allocation3], 1
    %372 = vsyncpa %s371, 1

// kernel: tpu_custom_call.1
$region0: #{tpu_custom_call.1}
  #allocation0 [shape = 'u32[]', space=smem, size = 0x4, offset = 0x4, fixed_abs, tag = 'smem constant byte address 0x4 - core index']
  #allocation1 [shape = 'u32[144,128]{1,0:T(1,128)}', space=vmem, size = 0x12000, scoped, tag = 'internal scratch']
  %s0 = inlined_call_operand.vmem [shape: f32[16,32], index: 0, kind: input, shape index: {}]
  %s1 = inlined_call_operand.vmem [shape: f32[32,16], index: 1, kind: input, shape index: {}]
  %s2 = inlined_call_operand.vmem [shape: s32[16,1], index: 2, kind: input, shape index: {}]
  %s3 = inlined_call_operand.vmem [shape: s32[1,16], index: 3, kind: input, shape index: {}]
  %s4 = inlined_call_operand.hbm [shape: f32[16,128], index: 4, kind: output, shape index: {}]
  %s5 = sld [smem:[#allocation0]]
  $region49: #{tpu_custom_call.1} parent=0
    _
  %s7 = ssub.s32 1, %s5
  %s8 = scalar_select 0, %s7, %s5
  $region1: #{tpu_custom_call.1} parent=0
    #allocation2 [shape = 'u8[8192]{0}', space=vmem, size = 0x2000, scoped, tag = 'output window, operand 0']
    #allocation3 [shape = 's32[2]{0}', space=sflag, size = 0x8, scoped, tag = 'scoped memory for tpu_custom_call.1']
    %9 = vsyncpa [#allocation3], 0
    %s10 = scalar_lea.sflag [#allocation3], 1
    %11 = vsyncpa %s10, 0
    loop: start=0, step=1, limit=4
    $region2: #{tpu_custom_call.1} parent=1 // loop_pre_header
      _
    $region3: #{tpu_custom_call.1} parent=1 // loop_header
      %s13 = sphi 0, %s17
      %p14 = scmp.ge.s32.totalorder %s13, 4
      %s23 = sphi 0, %s25
      %s26 = sphi 0, %s23
      %s27 = sphi 0, %s26
      %s43 = sphi 0, %s27
      %s47 = sphi 0, %s47
      %s49 = sphi 0, %s47
      %s50 = sphi 0, %s49
      %s64 = sphi 0, %s50
      %s70 = sphi 0, %s72
      %s73 = sphi 0, %s70
      %s74 = sphi 0, %s73
      %s90 = sphi 0, %s74
      %s94 = sphi 0, %s94
      %s96 = sphi 0, %s94
      %s97 = sphi 0, %s96
      %s111 = sphi 0, %s97
      %s117 = sphi 0, %s119
      %s120 = sphi 0, %s117
      %s121 = sphi 0, %s120
      %s137 = sphi 0, %s121
    $region4: #{tpu_custom_call.1} parent=1 // loop_header_branch
      %16 = sbr.rel (%p14) target = $region8
    $region5: #{tpu_custom_call.1} parent=1 // loop_body
      %s18 = ssub.s32 %s13, 1
      %s19 = ssub.s32 %s13, 2
      %s20 = sadd.s32 %s13, 1
      %s21 = ssub.s32 %s13, %s20
      %p22 = scmp.eq.s32.totalorder %s21, 0
      %s24 = sadd.s32 %s23, 1
      %s25 = scalar_select %p22, %s23, %s24
      %p28 = pneg %p22
      %p29 = scmp.eq.s32.totalorder %s13, 1
      %p30 = por %p28, %p29
      %p31 = scmp.ne.s32.totalorder %s23, %s26
      %p32 = scmp.eq.s32.totalorder %s13, 0
      %p33 = por %p31, %p32
      %p34 = scmp.ne.s32.totalorder %s23, %s26
      %p35 = scmp.eq.s32.totalorder %s18, 1
      %p36 = por %p34, %p35
      %p37 = scmp.ne.s32.totalorder %s26, %s27
      %p38 = scmp.eq.s32.totalorder %s18, 0
      %p39 = por %p37, %p38
      %p40 = scmp.ne.s32.totalorder %s26, %s27
      %p41 = scmp.eq.s32.totalorder %s19, 1
      %p42 = por %p40, %p41
      %p44 = scmp.ne.s32.totalorder %s27, %s43
      %p45 = scmp.eq.s32.totalorder %s19, 0
      %p46 = por %p44, %p45
      %s48 = sadd.s32 %s47, 1
      %p51 = scmp.eq.s32.totalorder %s13, 1
      %p52 = scmp.ne.s32.totalorder %s47, %s49
      %p53 = scmp.eq.s32.totalorder %s13, 0
      %p54 = por %p52, %p53
      %p55 = scmp.ne.s32.totalorder %s47, %s49
      %p56 = scmp.eq.s32.totalorder %s18, 1
      %p57 = por %p55, %p56
      %p58 = scmp.ne.s32.totalorder %s49, %s50
      %p59 = scmp.eq.s32.totalorder %s18, 0
      %p60 = por %p58, %p59
      %p61 = scmp.ne.s32.totalorder %s49, %s50
      %p62 = scmp.eq.s32.totalorder %s19, 1
      %p63 = por %p61, %p62
      %p65 = scmp.ne.s32.totalorder %s50, %s64
      %p66 = scmp.eq.s32.totalorder %s19, 0
      %p67 = por %p65, %p66
      %s68 = ssub.s32 %s13, %s20
      %p69 = scmp.eq.s32.totalorder %s68, 0
      %s71 = sadd.s32 %s70, 1
      %s72 = scalar_select %p69, %s70, %s71
      %p75 = pneg %p69
      %p76 = scmp.eq.s32.totalorder %s13, 1
      %p77 = por %p75, %p76
      %p78 = scmp.ne.s32.totalorder %s70, %s73
      %p79 = scmp.eq.s32.totalorder %s13, 0
      %p80 = por %p78, %p79
      %p81 = scmp.ne.s32.totalorder %s70, %s73
      %p82 = scmp.eq.s32.totalorder %s18, 1
      %p83 = por %p81, %p82
      %p84 = scmp.ne.s32.totalorder %s73, %s74
      %p85 = scmp.eq.s32.totalorder %s18, 0
      %p86 = por %p84, %p85
      %p87 = scmp.ne.s32.totalorder %s73, %s74
      %p88 = scmp.eq.s32.totalorder %s19, 1
      %p89 = por %p87, %p88
      %p91 = scmp.ne.s32.totalorder %s74, %s90
      %p92 = scmp.eq.s32.totalorder %s19, 0
      %p93 = por %p91, %p92
      %s95 = sadd.s32 %s94, 1
      %p98 = scmp.eq.s32.totalorder %s13, 1
      %p99 = scmp.ne.s32.totalorder %s94, %s96
      %p100 = scmp.eq.s32.totalorder %s13, 0
      %p101 = por %p99, %p100
      %p102 = scmp.ne.s32.totalorder %s94, %s96
      %p103 = scmp.eq.s32.totalorder %s18, 1
      %p104 = por %p102, %p103
      %p105 = scmp.ne.s32.totalorder %s96, %s97
      %p106 = scmp.eq.s32.totalorder %s18, 0
      %p107 = por %p105, %p106
      %p108 = scmp.ne.s32.totalorder %s96, %s97
      %p109 = scmp.eq.s32.totalorder %s19, 1
      %p110 = por %p108, %p109
      %p112 = scmp.ne.s32.totalorder %s97, %s111
      %p113 = scmp.eq.s32.totalorder %s19, 0
      %p114 = por %p112, %p113
      %s115 = ssub.s32 %s13, %s20
      %p116 = scmp.eq.s32.totalorder %s115, 0
      %s118 = sadd.s32 %s117, 1
      %s119 = scalar_select %p116, %s117, %s118
      %p122 = pneg %p116
      %p123 = scmp.eq.s32.totalorder %s13, 1
      %p124 = por %p122, %p123
      %p125 = scmp.ne.s32.totalorder %s117, %s120
      %p126 = scmp.eq.s32.totalorder %s13, 0
      %p127 = por %p125, %p126
      %p128 = scmp.ne.s32.totalorder %s117, %s120
      %p129 = scmp.eq.s32.totalorder %s18, 1
      %p130 = por %p128, %p129
      %p131 = scmp.ne.s32.totalorder %s120, %s121
      %p132 = scmp.eq.s32.totalorder %s18, 0
      %p133 = por %p131, %p132
      %p134 = scmp.ne.s32.totalorder %s120, %s121
      %p135 = scmp.eq.s32.totalorder %s19, 1
      %p136 = por %p134, %p135
      %p138 = scmp.ne.s32.totalorder %s121, %s137
      %p139 = scmp.eq.s32.totalorder %s19, 0
      %p140 = por %p138, %p139
      %p141 = scmp.le.s32.totalorder 1, %s13
      %p142 = scmp.lt.s32.totalorder %s13, 3
      %p143 = pnand %p141, %p142
      %p144 = pneg %p143
      // Predicated region
      $region9: #{tpu_custom_call.1} parent=5 // pred_check
        _
      $region10: #{tpu_custom_call.1} parent=5 // pred_check_branch
        %146 = sbr.rel (%p143) target = $region12
      $region11: #{tpu_custom_call.1} parent=5 // pred_region
        %s147 = ssub.s32 %s13, 1
        // Predicated region
        $region13: #{tpu_custom_call.1} parent=11 // pred_check
          %p148 = pneg %p60
        $region14: #{tpu_custom_call.1} parent=11 // pred_check_branch
          %150 = sbr.rel (%p148) target = $region16
        $region15: #{tpu_custom_call.1} parent=11 // pred_region
          _
        $region16: #{tpu_custom_call.1} parent=11 // pred_fallthru
          _
        // Predicated region
        $region17: #{tpu_custom_call.1} parent=11 // pred_check
          %p151 = pneg %p107
        $region18: #{tpu_custom_call.1} parent=11 // pred_check_branch
          %153 = sbr.rel (%p151) target = $region20
        $region19: #{tpu_custom_call.1} parent=11 // pred_region
          _
        $region20: #{tpu_custom_call.1} parent=11 // pred_fallthru
          _
      $region12: #{tpu_custom_call.1} parent=5 // pred_fallthru
        _
      %p154 = scmp.lt.s32.totalorder %s13, 2
      // Predicated region
      $region21: #{tpu_custom_call.1} parent=5 // pred_check
        %p155 = pneg %p154
      $region22: #{tpu_custom_call.1} parent=5 // pred_check_branch
        %157 = sbr.rel (%p155) target = $region24
      $region23: #{tpu_custom_call.1} parent=5 // pred_region
        // Predicated region
        $region25: #{tpu_custom_call.1} parent=23 // pred_check
          %p158 = pneg %p33
        $region26: #{tpu_custom_call.1} parent=23 // pred_check_branch
          %160 = sbr.rel (%p158) target = $region28
        $region27: #{tpu_custom_call.1} parent=23 // pred_region
          %p161 = scmp.lt.s32.totalorder %s13, 1
          %s162 = scalar_select %p161, %s13, 1
          %s163 = smul.addr %s162, 8
          %s164 = scalar_lea.vmem %s0, %s163
        $region28: #{tpu_custom_call.1} parent=23 // pred_fallthru
          _
        // Predicated region
        $region29: #{tpu_custom_call.1} parent=23 // pred_check
          %p165 = pneg %p80
        $region30: #{tpu_custom_call.1} parent=23 // pred_check_branch
          %167 = sbr.rel (%p165) target = $region32
        $region31: #{tpu_custom_call.1} parent=23 // pred_region
          %p168 = scmp.lt.s32.totalorder %s13, 1
          %s169 = scalar_select %p168, %s13, 1
          %s170 = smul.addr %s169, 8
          %s171 = scalar_lea.vmem %s2, %s170
        $region32: #{tpu_custom_call.1} parent=23 // pred_fallthru
          _
      $region24: #{tpu_custom_call.1} parent=5 // pred_fallthru
        _
      %p172 = scmp.le.s32.totalorder 1, %s13
      %p173 = scmp.lt.s32.totalorder %s13, 3
      %p174 = pnand %p172, %p173
      %p175 = pneg %p174
      // Predicated region
      $region33: #{tpu_custom_call.1} parent=5 // pred_check
        _
      $region34: #{tpu_custom_call.1} parent=5 // pred_check_branch
        %177 = sbr.rel (%p174) target = $region36
      $region35: #{tpu_custom_call.1} parent=5 // pred_region
        %s178 = ssub.s32 %s13, 1
        %p179 = scmp.lt.s32.totalorder %s18, 1
        %s180 = scalar_select %p179, %s18, 1
        %s181 = smul.addr %s180, 8
        %s182 = scalar_lea.vmem %s0, %s181
        %p183 = pneg %p39
        %p184 = pneg %p36
        %p185 = pneg %p60
        %p186 = pneg %p57
        %p187 = scmp.lt.s32.totalorder %s18, 1
        %s188 = scalar_select %p187, %s18, 1
        %s189 = smul.addr %s188, 8
        %s190 = scalar_lea.vmem %s2, %s189
        %p191 = pneg %p86
        %p192 = pneg %p83
        %p193 = pneg %p107
        %p194 = pneg %p104
        %p195 = pneg %p133
        %p196 = pneg %p130
        %s197 = sand.u32 %s120, 1
        %s198 = scalar_lea.sflag [#allocation3], %s197
        %s199 = sand.u32 %s120, 1
        %s200 = smul.addr %s199, 8
        %s201 = scalar_lea.vmem [#allocation2], %s200
        %p202 = scmp.lt.s32.totalorder %s18, 1
        %s203 = scalar_select %p202, %s18, 1
        %s204 = smul.addr %s203, 8
        %s205 = scalar_lea.vmem %s0, %s204
        %p206 = scmp.lt.s32.totalorder %s18, 1
        %s207 = scalar_select %p206, %s18, 1
        %s208 = smul.addr %s207, 8
        %s209 = scalar_lea.vmem %s2, %s208
        %v210 = vld [vmem:[%s205] sm:$0xff]
        %v211 = vmul.f32 %v210, 14.285714
        %v212 = vld [vmem:[%s1] sm:$0xff]
        %v213 = vld [vmem:[%s1 + $0x8] sm:$0xff]
        %v214 = vld [vmem:[%s1 + $0x10] sm:$0xff]
        %v215 = vld [vmem:[%s1 + $0x18] sm:$0xff]
        %vm216 = vcmask 261120
        %v218 = vsel %vm216, %v211, 0
        %220 = vmatprep.subr.mxu0 0.0
        %221 = vmatpush1.msra.mxu0 0.0
        %222 = vmatprep.subr.mxu0 0.0
        %223 = vmatpush1.msra.mxu0 0.0
        %224 = vmatprep.subr.mxu0 0.0
        %225 = vmatpush1.msra.mxu0 0.0
        %226 = vmatprep.subr.mxu0 0.0
        %227 = vmatpush1.msra.mxu0 0.0
        %228 = vmatprep.subr.mxu0 0.0
        %229 = vmatpush1.msra.mxu0 0.0
        %230 = vmatprep.subr.mxu0 0.0
        %231 = vmatpush1.msra.mxu0 0.0
        %232 = vmatprep.subr.mxu0 0.0
        %233 = vmatpush1.msra.mxu0 0.0
        %234 = vmatprep.subr.mxu0 0.0
        %235 = vmatpush1.msra.mxu0 0.0
        %236 = vmatprep.subr.mxu0 0.0
        %237 = vmatpush1.msra.mxu0 0.0
        %238 = vmatprep.subr.mxu0 0.0
        %239 = vmatpush1.msra.mxu0 0.0
        %240 = vmatprep.subr.mxu0 0.0
        %241 = vmatpush1.msra.mxu0 0.0
        %242 = vmatprep.subr.mxu0 0.0
        %243 = vmatpush1.msra.mxu0 0.0
        %244 = vmatprep.subr.mxu0 0.0
        %245 = vmatpush1.msra.mxu0 %v215
        %246 = vmatprep.subr.mxu0 0.0
        %247 = vmatpush1.msra.mxu0 %v214
        %248 = vmatprep.subr.mxu0 0.0
        %249 = vmatpush1.msra.mxu0 %v213
        %250 = vmatprep.subr.mxu0 0.0
        %251 = vmatpush1.msra.mxu0 %v212
        %252 = vmatprep.subr.mxu0 0.0
        %253 = vmatpush2.msra.mxu0 0.0
        %254 = vmatprep.subr.mxu0 0.0
        %255 = vmatpush2.msra.mxu0 0.0
        %256 = vmatprep.subr.mxu0 0.0
        %257 = vmatpush2.msra.mxu0 0.0
        %258 = vmatprep.subr.mxu0 0.0
        %259 = vmatpush2.msra.mxu0 0.0
        %260 = vmatprep.subr.mxu0 0.0
        %261 = vmatpush2.msra.mxu0 0.0
        %262 = vmatprep.subr.mxu0 0.0
        %263 = vmatpush2.msra.mxu0 0.0
        %264 = vmatprep.subr.mxu0 0.0
        %265 = vmatpush2.msra.mxu0 0.0
        %266 = vmatprep.subr.mxu0 0.0
        %267 = vmatpush2.msra.mxu0 0.0
        %268 = vmatprep.subr.mxu0 0.0
        %269 = vmatpush2.msra.mxu0 0.0
        %270 = vmatprep.subr.mxu0 0.0
        %271 = vmatpush2.msra.mxu0 0.0
        %272 = vmatprep.subr.mxu0 0.0
        %273 = vmatpush2.msra.mxu0 0.0
        %274 = vmatprep.subr.mxu0 0.0
        %275 = vmatpush2.msra.mxu0 0.0
        %276 = vmatprep.subr.mxu0 0.0
        %277 = vmatpush2.msra.mxu0 0.0
        %278 = vmatprep.subr.mxu0 0.0
        %279 = vmatpush2.msra.mxu0 0.0
        %280 = vmatprep.subr.mxu0 0.0
        %281 = vmatpush2.msra.mxu0 0.0
        %282 = vmatprep.subr.mxu0 0.0
        %283 = vmatpush2.msra.mxu0 0.0
        %284 = vmatprep.mubr.f32.mxu0 0.0
        %285 = vmatmul.mubr.f32.gmra.mxu0 %v218
        %v286 = vpop.f32.mrf.mxu0
        %v287 = vadd.f32 0.0, %v286
        %v288 = vpop.f32.mrf.mxu0
        %289 = vdwg.mxu0
        %v290 = vlaneseq
        %v291 = vshrl.u32 %v290, 7
        %s292 = smul.u32 %s18, 8
        %v293 = vstv %s292
        %v294 = vadd.s32 %v291, %v293
        %v295 = vlaneseq
        %v296 = vand.u32 %v295, 127
        %vm297 = vcmp.eq.s32.totalorder %v294, %v296
        %v298 = vsel %vm297, -1e+30, %v287
        %vm299 = vcmask 130048
        %v300 = vsel %vm299, %v298, -inf
        %301 = vmax.xlane.f32.xlu0 %v300
        %v302 = vpop.xlane.xlu0 %301
        %v303 = vsub.f32 %v298, %v302
        %v304 = vmul.f32 %v303, 1.442695
        %v305 = vpow.pop %v304
        %v306 = vsel %vm299, %v305, 0.0
        %307 = vadd.xlane.f32.xlu0 %v306
        %v308 = vpop.xlane.xlu0 %307
        %v309 = vlog2.pop %v308
        %v310 = vmul.f32 %v309, 0.6931472
        %v311 = vld [vmem:[%s209] sm:$0xff]
        %v312 = vld [vmem:[%s3] sm:$0x1]
        %313 = vset.pattern.permute.xlu0 0
        %314 = vperm.xlu0 %313, %v311
        %v315 = vpop.permute.xlu0 %314
        %v316 = vlaneseq
        %v317 = vshrl.u32 %v316, 7
        %v318 = vsub.s32 0, %v317
        %v319 = vrot.slane %v312, %v318
        %vm320 = vcmp.eq.s32.totalorder %v315, %v319
        %vm321 = vmxor %vm297, 1
        %vm322 = vmand %vm320, %vm321
        %v323 = vsel %vm322, %v303, 0.0
        %v324 = vsel %vm299, %v323, 0.0
        %325 = vadd.xlane.f32.xlu0 %v324
        %v326 = vpop.xlane.xlu0 %325
        %v327 = vsel %vm322, 1.0, 0.0
        %v328 = vsel %vm299, %v327, 0.0
        %329 = vadd.xlane.f32.xlu0 %v328
        %v330 = vpop.xlane.xlu0 %329
        %v331 = vmul.f32 %v330, %v310
        %v332 = vsub.f32 %v326, %v331
        %vm333 = vcmp.eq.s32.totalorder %v296, 0
        %vm334 = vcmp.eq.s32.totalorder %v296, 1
        %v335 = vsel %vm334, %v330, 0.0
        %v336 = vsel %vm333, %v332, %v335
        %337 = vst [vmem:[%s201] sm:$0xff] %v336
        %s338 = sand.u32 %s120, 1
        %s339 = scalar_lea.sflag [#allocation3], %s338
        %s340 = sand.u32 %s120, 1
        %s341 = smul.addr %s340, 8
        %s342 = scalar_lea.vmem [#allocation2], %s341
        // Predicated region
        $region37: #{tpu_custom_call.1} parent=35 // pred_check
          %p343 = pneg %p130
        $region38: #{tpu_custom_call.1} parent=35 // pred_check_branch
          %345 = sbr.rel (%p343) target = $region40
        $region39: #{tpu_custom_call.1} parent=35 // pred_region
          %s347 = ssub.s32 128, 128
          %348 = vsyncadd %s339, %s347
          %s349 = smul.addr %s18, 128
          %s350 = scalar_lea.hbm %s4, %s349
          %s352 = sshll.u32 %s342, 4
          %s353 = int_to_ptr.vmem [resolvable:$true] %s352
          %355 = dma.vmem_to_hbm [thread:$0]  %s353, 128, %s350, %s339
        $region40: #{tpu_custom_call.1} parent=35 // pred_fallthru
          _
      $region36: #{tpu_custom_call.1} parent=5 // pred_fallthru
        _
      %p356 = scmp.le.s32.totalorder 2, %s13
      // Predicated region
      $region41: #{tpu_custom_call.1} parent=5 // pred_check
        %p357 = pneg %p356
      $region42: #{tpu_custom_call.1} parent=5 // pred_check_branch
        %359 = sbr.rel (%p357) target = $region44
      $region43: #{tpu_custom_call.1} parent=5 // pred_region
        %s360 = ssub.s32 %s13, 2
        // Predicated region
        $region45: #{tpu_custom_call.1} parent=43 // pred_check
          %p361 = pneg %p136
        $region46: #{tpu_custom_call.1} parent=43 // pred_check_branch
          %363 = sbr.rel (%p361) target = $region48
        $region47: #{tpu_custom_call.1} parent=43 // pred_region
          %s364 = sand.u32 %s121, 1
          %s365 = scalar_lea.sflag [#allocation3], %s364
          %s366 = sand.u32 %s121, 1
          %s367 = smul.addr %s366, 8
          %s368 = scalar_lea.vmem [#allocation2], %s367
          %369 = dma.done %s365, 128
        $region48: #{tpu_custom_call.1} parent=43 // pred_fallthru
          _
      $region44: #{tpu_custom_call.1} parent=5 // pred_fallthru
        _
    $region6: #{tpu_custom_call.1} parent=1 // loop_footer
      %s17 = sadd.s32 1, %s13
    $region7: #{tpu_custom_call.1} parent=1 // loop_footer_branch
      %12 = sbr.rel target = $region3
    $region8: #{tpu_custom_call.1} parent=1 // loop_exit
      _
    %370 = vsyncpa [#allocation3], 1
    %s371 = scalar_lea.sflag [#allocation3], 1
    %372 = vsyncpa %s371, 1

</llo_original>
